<compile_context>
chip_gen: v5e
topology: v5e:2x2
jax: 0.10.0
libtpu: 0.0.40
codegen_flags: <defaults>
</compile_context>

<pallas_src>
import jax
import jax.numpy as jnp
import numpy as np
from jax.experimental import pallas as pl
from jax.experimental.pallas import tpu as pltpu

AVGR = 0.9       # self.avgr (hard-coded to 0.9 in __init__)
TAU = 0.9        # self.tau  (hard-coded to 0.9 in __init__)
BN_EPS = 1e-5    # torch.nn.BatchNorm2d default eps
COV_EPS = 1e-6   # eps used in the covariance term of adapt()

# Target per-block footprint for the streaming passes. With double-buffered
# input + output tiles this stays comfortably inside scoped VMEM on
# v5e/v6e/v7x while keeping per-grid-step overhead well amortized.
_TARGET_BLOCK_BYTES = 4 * 1024 * 1024
_VMEM_LIMIT_BYTES = 48 * 1024 * 1024   # < 64 MiB physical VMEM on v7x


def _pick_tile(total, target, align):
    """Largest multiple of `align` that divides `total` and is <= target.

    Falls back to the full extent when `total` is not `align`-aligned (a full
    block is always a legal BlockSpec block shape)."""
    if total <= 0 or total % align != 0:
        return total
    t = min(max(target, align), total)
    t -= t % align
    while t >= align:
        if total % t == 0:
            return t
        t -= align
    return total


def _stats_kernel(x_ref, sum_ref, sq_ref):
    # x_ref: (1, tc, thw) tile of x[0]; sum_ref/sq_ref: (tc, 1) f32 accumulators
    # that stay resident in VMEM across the HW (reduction) grid axis.
    @pl.when(pl.program_id(1) == 0)
    def _():
        sum_ref[...] = jnp.zeros_like(sum_ref)
        sq_ref[...] = jnp.zeros_like(sq_ref)

    x = x_ref[0].astype(jnp.float32)                         # (tc, thw)
    sum_ref[...] += jnp.sum(x, axis=1, keepdims=True)
    sq_ref[...] += jnp.sum(x * x, axis=1, keepdims=True)


def _apply_kernel(x_ref, scale_ref, shift_ref, o_ref):
    # x_ref/o_ref: (1, tc, thw); scale/shift: (tc, 1) f32.
    # Single fused multiply-add per element; params broadcast along lanes.
    x = x_ref[...].astype(jnp.float32)
    scale = scale_ref[...][None, :, :]                       # (1, tc, 1)
    shift = shift_ref[...][None, :, :]                       # (1, tc, 1)
    o_ref[...] = (x * scale + shift).astype(o_ref.dtype)


@jax.jit
def balanced_batch_norm(x, running_mean, running_var, gamma, beta):
    """x: (N, C, H, W); params: (C,). Returns (N, C, H, W) in x.dtype."""
    N, C, H, W = x.shape
    HW = H * W
    xf = x.reshape(N, C, HW)
    itemsize = jnp.dtype(x.dtype).itemsize

    # Lane-dense HW tile first (caps an 8-channel block at the target size),
    # then size the channel tile to hit the per-block byte target.
    thw = _pick_tile(HW, max(128, _TARGET_BLOCK_BYTES // (itemsize * 8)), 128)
    tc = _pick_tile(C, max(8, _TARGET_BLOCK_BYTES // (itemsize * thw)), 8)
    grid_c = C // tc
    grid_h = HW // thw

    # ---- Phase 1: streamed per-channel sum / sum-of-squares over x[0] ----
    sums, sqs = pl.pallas_call(
        _stats_kernel,
        out_shape=(jax.ShapeDtypeStruct((C, 1), jnp.float32),
                   jax.ShapeDtypeStruct((C, 1), jnp.float32)),
        grid=(grid_c, grid_h),
        in_specs=[
            # Tile only batch element 0 straight out of the full array.
            pl.BlockSpec((1, tc, thw), lambda c, h: (0, c, h)),
        ],
        out_specs=(
            pl.BlockSpec((tc, 1), lambda c, h: (c, 0)),
            pl.BlockSpec((tc, 1), lambda c, h: (c, 0)),
        ),
        compiler_params=pltpu.CompilerParams(
            dimension_semantics=("parallel", "arbitrary"),
            vmem_limit_bytes=_VMEM_LIMIT_BYTES),
    )(xf)

    # ---- O(C) epilogue: blend, scalar gate, folded scale/shift (JAX) ----
    rm = running_mean.astype(jnp.float32).reshape(C, 1)
    rv = running_var.astype(jnp.float32).reshape(C, 1)
    g = gamma.astype(jnp.float32).reshape(C, 1)
    b = beta.astype(jnp.float32).reshape(C, 1)

    inv_hw = 1.0 / float(HW)
    bm = sums * inv_hw                                        # mean(x[0]) per channel
    bv = jnp.maximum(sqs * inv_hw - bm * bm, 0.0)             # biased var (one-pass)

    nm = AVGR * rm + (1.0 - AVGR) * bm
    nv = AVGR * rv + (1.0 - AVGR) * bv
    md = nm - rm
    t = jnp.sum(md * md / (rv + COV_EPS))                     # Mahalanobis gate
    temp = TAU * (1.0 - jnp.exp(-t))
    am = temp * rm + (1.0 - temp) * nm
    av = temp * rv + (1.0 - temp) * nv

    inv_std = jax.lax.rsqrt(av + BN_EPS)
    scale = g * inv_std                                       # (C, 1)
    shift = b - am * scale                                    # (C, 1)

    # ---- Phase 2: tiled, pipelined elementwise apply over the full tensor ----
    out = pl.pallas_call(
        _apply_kernel,
        out_shape=jax.ShapeDtypeStruct((N, C, HW), x.dtype),
        grid=(N, grid_c, grid_h),
        in_specs=[
            pl.BlockSpec((1, tc, thw), lambda n, c, h: (n, c, h)),
            pl.BlockSpec((tc, 1), lambda n, c, h: (c, 0)),
            pl.BlockSpec((tc, 1), lambda n, c, h: (c, 0)),
        ],
        out_specs=pl.BlockSpec((1, tc, thw), lambda n, c, h: (n, c, h)),
        compiler_params=pltpu.CompilerParams(
            dimension_semantics=("parallel", "parallel", "parallel"),
            vmem_limit_bytes=_VMEM_LIMIT_BYTES),
    )(xf, scale, shift)

    return out.reshape(N, C, H, W)


def _reference(x, rm, rv, gamma, beta):
    # Pure-JAX reference mirroring the PyTorch forward (eval-mode BN, float path).
    x32 = x.astype(jnp.float32)
    x0 = x32[0]                                               # (C, H, W)
    bm = jnp.mean(x0, axis=(1, 2))
    bv = jnp.var(x0, axis=(1, 2))                             # biased
    nm = AVGR * rm + (1.0 - AVGR) * bm
    nv = AVGR * rv + (1.0 - AVGR) * bv
    md = nm - rm
    t = jnp.sum(md * md / (rv + COV_EPS))
    temp = TAU * (1.0 - jnp.exp(-t))
    am = temp * rm + (1.0 - temp) * nm
    av = temp * rv + (1.0 - temp) * nv
    inv = 1.0 / jnp.sqrt(av + BN_EPS)
    y = (x32 - am[None, :, None, None]) * (gamma * inv)[None, :, None, None] \
        + beta[None, :, None, None]
    return y.astype(x.dtype)


if __name__ == "__main__":
    key = jax.random.PRNGKey(0)
    k_x, k_rm, k_rv, k_g, k_b = jax.random.split(key, 5)

    N, C, H, W = 2, 4, 16, 16
    x = jax.random.normal(k_x, (N, C, H, W), dtype=jnp.float32) * 2.0 + 0.5
    running_mean = jax.random.normal(k_rm, (C,), dtype=jnp.float32) * 0.1
    running_var = jax.random.uniform(k_rv, (C,), dtype=jnp.float32,
                                     minval=0.5, maxval=1.5)
    gamma = 1.0 + 0.1 * jax.random.normal(k_g, (C,), dtype=jnp.float32)
    beta = 0.1 * jax.random.normal(k_b, (C,), dtype=jnp.float32)

    out = balanced_batch_norm(x, running_mean, running_var, gamma, beta)
    out = jax.block_until_ready(out)

    ref = _reference(x, running_mean, running_var, gamma, beta)
    np.testing.assert_allclose(np.asarray(out), np.asarray(ref),
                               rtol=1e-5, atol=1e-5)
    print("KERNEL_OK")

    # TODO(synk): quantized input path (int_repr / scale / zero_point of
    # torch.ao.nn.quantized.BatchNorm2d) is not translated; float path only.
</pallas_src>

<mosaic_0001>
module attributes {stable_mosaic.version = 11 : i64} {
  func.func @_stats_kernel(%arg0: i32, %arg1: i32, %arg2: memref<1x4x256xf32, #tpu.memory_space<vmem>>, %arg3: memref<4x1xf32, #tpu.memory_space<vmem>>, %arg4: memref<4x1xf32, #tpu.memory_space<vmem>>) attributes {dimension_semantics = [#tpu.dimension_semantics<parallel>, #tpu.dimension_semantics<arbitrary>], iteration_bounds = array<i64: 1, 1>, scalar_prefetch = 0 : i64, scratch_operands = 0 : i64, tpu.core_type = #tpu.core_type<tc>, window_params = [{transform_indices = @transform_0, window_bounds = array<i64: 1, 4, 256>}, {transform_indices = @transform_1, window_bounds = array<i64: 4, 1>}, {transform_indices = @transform_2, window_bounds = array<i64: 4, 1>}]} {
    %c0_i32 = arith.constant 0 : i32
    %0 = arith.cmpi eq, %arg1, %c0_i32 : i32
    %1 = arith.extui %0 : i1 to i32
    %c0_i32_0 = arith.constant 0 : i32
    %2 = arith.cmpi ne, %1, %c0_i32_0 : i32
    scf.if %2 {
      %cst_12 = arith.constant 0.000000e+00 : f32
      %16 = vector.broadcast %cst_12 : f32 to vector<4x1xf32>
      %c0_13 = arith.constant 0 : index
      %c0_14 = arith.constant 0 : index
      %17 = vector.load %arg3[%c0_13, %c0_14] : memref<4x1xf32, #tpu.memory_space<vmem>>, vector<4x1xf32>
      tpu.vector_store %arg3[%c0_13, %c0_14], %16 {strides = array<i32>} : memref<4x1xf32, #tpu.memory_space<vmem>>, vector<4x1xf32>,
      %cst_15 = arith.constant 0.000000e+00 : f32
      %18 = vector.broadcast %cst_15 : f32 to vector<4x1xf32>
      %c0_16 = arith.constant 0 : index
      %c0_17 = arith.constant 0 : index
      %19 = vector.load %arg4[%c0_16, %c0_17] : memref<4x1xf32, #tpu.memory_space<vmem>>, vector<4x1xf32>
      tpu.vector_store %arg4[%c0_16, %c0_17], %18 {strides = array<i32>} : memref<4x1xf32, #tpu.memory_space<vmem>>, vector<4x1xf32>,
    } else {
    }
    %c0 = arith.constant 0 : index
    %c0_1 = arith.constant 0 : index
    %c0_2 = arith.constant 0 : index
    %3 = vector.load %arg2[%c0, %c0_1, %c0_2] : memref<1x4x256xf32, #tpu.memory_space<vmem>>, vector<1x4x256xf32>
    %4 = vector.shape_cast %3 : vector<1x4x256xf32> to vector<4x256xf32>
    %c0_3 = arith.constant 0 : index
    %c0_4 = arith.constant 0 : index
    %5 = vector.load %arg3[%c0_3, %c0_4] : memref<4x1xf32, #tpu.memory_space<vmem>>, vector<4x1xf32>
    %cst = arith.constant dense<0.000000e+00> : vector<4xf32>
    %6 = vector.multi_reduction <add>, %4, %cst [1] : vector<4x256xf32> to vector<4xf32>
    %7 = vector.shape_cast %6 : vector<4xf32> to vector<4x1xf32>
    %8 = arith.addf %5, %7 : vector<4x1xf32>
    %c0_5 = arith.constant 0 : index
    %c0_6 = arith.constant 0 : index
    %9 = vector.load %arg3[%c0_5, %c0_6] : memref<4x1xf32, #tpu.memory_space<vmem>>, vector<4x1xf32>
    tpu.vector_store %arg3[%c0_5, %c0_6], %8 {strides = array<i32>} : memref<4x1xf32, #tpu.memory_space<vmem>>, vector<4x1xf32>,
    %c0_7 = arith.constant 0 : index
    %c0_8 = arith.constant 0 : index
    %10 = vector.load %arg4[%c0_7, %c0_8] : memref<4x1xf32, #tpu.memory_space<vmem>>, vector<4x1xf32>
    %11 = arith.mulf %4, %4 : vector<4x256xf32>
    %cst_9 = arith.constant dense<0.000000e+00> : vector<4xf32>
    %12 = vector.multi_reduction <add>, %11, %cst_9 [1] : vector<4x256xf32> to vector<4xf32>
    %13 = vector.shape_cast %12 : vector<4xf32> to vector<4x1xf32>
    %14 = arith.addf %10, %13 : vector<4x1xf32>
    %c0_10 = arith.constant 0 : index
    %c0_11 = arith.constant 0 : index
    %15 = vector.load %arg4[%c0_10, %c0_11] : memref<4x1xf32, #tpu.memory_space<vmem>>, vector<4x1xf32>
    tpu.vector_store %arg4[%c0_10, %c0_11], %14 {strides = array<i32>} : memref<4x1xf32, #tpu.memory_space<vmem>>, vector<4x1xf32>,
    return
  }
  func.func @transform_0(%arg0: i32, %arg1: i32) -> (i32, i32, i32) {
    %c0_i32 = arith.constant 0 : i32
    %c0_i32_0 = arith.constant 0 : i32
    return %c0_i32, %arg0, %arg1 : i32, i32, i32
  }
  func.func @transform_1(%arg0: i32, %arg1: i32) -> (i32, i32) {
    %c0_i32 = arith.constant 0 : i32
    %c0_i32_0 = arith.constant 0 : i32
    return %arg0, %c0_i32 : i32, i32
  }
  func.func @transform_2(%arg0: i32, %arg1: i32) -> (i32, i32) {
    %c0_i32 = arith.constant 0 : i32
    %c0_i32_0 = arith.constant 0 : i32
    return %arg0, %c0_i32 : i32, i32
  }
}

module attributes {stable_mosaic.version = 11 : i64} {
  func.func @_apply_kernel(%arg0: i32, %arg1: i32, %arg2: i32, %arg3: memref<1x4x256xf32, #tpu.memory_space<vmem>>, %arg4: memref<4x1xf32, #tpu.memory_space<vmem>>, %arg5: memref<4x1xf32, #tpu.memory_space<vmem>>, %arg6: memref<1x4x256xf32, #tpu.memory_space<vmem>>) attributes {dimension_semantics = [#tpu.dimension_semantics<parallel>, #tpu.dimension_semantics<parallel>, #tpu.dimension_semantics<parallel>], iteration_bounds = array<i64: 2, 1, 1>, scalar_prefetch = 0 : i64, scratch_operands = 0 : i64, tpu.core_type = #tpu.core_type<tc>, window_params = [{transform_indices = @transform_0, window_bounds = array<i64: 1, 4, 256>}, {transform_indices = @transform_1, window_bounds = array<i64: 4, 1>}, {transform_indices = @transform_2, window_bounds = array<i64: 4, 1>}, {transform_indices = @transform_3, window_bounds = array<i64: 1, 4, 256>}]} {
    %c0 = arith.constant 0 : index
    %c0_0 = arith.constant 0 : index
    %c0_1 = arith.constant 0 : index
    %0 = vector.load %arg3[%c0, %c0_0, %c0_1] : memref<1x4x256xf32, #tpu.memory_space<vmem>>, vector<1x4x256xf32>
    %c0_2 = arith.constant 0 : index
    %c0_3 = arith.constant 0 : index
    %1 = vector.load %arg4[%c0_2, %c0_3] : memref<4x1xf32, #tpu.memory_space<vmem>>, vector<4x1xf32>
    %2 = vector.shape_cast %1 : vector<4x1xf32> to vector<1x4x1xf32>
    %c0_4 = arith.constant 0 : index
    %c0_5 = arith.constant 0 : index
    %3 = vector.load %arg5[%c0_4, %c0_5] : memref<4x1xf32, #tpu.memory_space<vmem>>, vector<4x1xf32>
    %4 = vector.shape_cast %3 : vector<4x1xf32> to vector<1x4x1xf32>
    %5 = vector.broadcast %2 : vector<1x4x1xf32> to vector<1x4x256xf32>
    %6 = arith.mulf %0, %5 : vector<1x4x256xf32>
    %7 = vector.broadcast %4 : vector<1x4x1xf32> to vector<1x4x256xf32>
    %8 = arith.addf %6, %7 : vector<1x4x256xf32>
    %c0_6 = arith.constant 0 : index
    %c0_7 = arith.constant 0 : index
    %c0_8 = arith.constant 0 : index
    %9 = vector.load %arg6[%c0_6, %c0_7, %c0_8] : memref<1x4x256xf32, #tpu.memory_space<vmem>>, vector<1x4x256xf32>
    tpu.vector_store %arg6[%c0_6, %c0_7, %c0_8], %8 {strides = array<i32>} : memref<1x4x256xf32, #tpu.memory_space<vmem>>, vector<1x4x256xf32>,
    return
  }
  func.func @transform_0(%arg0: i32, %arg1: i32, %arg2: i32) -> (i32, i32, i32) {
    %c0_i32 = arith.constant 0 : i32
    return %arg0, %arg1, %arg2 : i32, i32, i32
  }
  func.func @transform_1(%arg0: i32, %arg1: i32, %arg2: i32) -> (i32, i32) {
    %c0_i32 = arith.constant 0 : i32
    %c0_i32_0 = arith.constant 0 : i32
    return %arg1, %c0_i32 : i32, i32
  }
  func.func @transform_2(%arg0: i32, %arg1: i32, %arg2: i32) -> (i32, i32) {
    %c0_i32 = arith.constant 0 : i32
    %c0_i32_0 = arith.constant 0 : i32
    return %arg1, %c0_i32 : i32, i32
  }
  func.func @transform_3(%arg0: i32, %arg1: i32, %arg2: i32) -> (i32, i32, i32) {
    %c0_i32 = arith.constant 0 : i32
    return %arg0, %arg1, %arg2 : i32, i32, i32
  }
}

</mosaic_0001>

<llo_original>
// kernel: balanced_batch_norm.2
$region0: #{balanced_batch_norm.2}
  #allocation0 [shape = 'u32[]', space=smem, size = 0x4, offset = 0x4, fixed_abs, tag = 'smem constant byte address 0x4 - core index']
  #allocation1 [shape = 'u32[72,128]{1,0:T(1,128)}', space=vmem, size = 0x9000, scoped, tag = 'internal scratch']
  %s0 = inlined_call_operand.vmem [shape: f32[2,4,256], index: 0, kind: input, shape index: {}]
  %s1 = inlined_call_operand.vmem [shape: f32[4,1], index: 1, kind: output, shape index: {0}]
  %s2 = inlined_call_operand.vmem [shape: f32[4,1], index: 2, kind: output, shape index: {1}]
  %3 = xla_tuple %s1, %s2
  %s4 = sld [smem:[#allocation0]]
  $region26: #{balanced_batch_norm.2} parent=0
    _
  %s6 = ssub.s32 1, %s4
  %s7 = scalar_select 0, %s6, %s4
  // Predicated region
  $region2: #{balanced_batch_norm.2} parent=0 // pred_check
    _
  $region3: #{balanced_batch_norm.2} parent=0 // pred_check_branch
    %9 = sbr.rel (0) target = $region5
  $region4: #{balanced_batch_norm.2} parent=0 // pred_region
    _
  $region5: #{balanced_batch_norm.2} parent=0 // pred_fallthru
    _
  %p10 = scmp.eq.s32.totalorder 0, 0
  // Predicated region
  $region6: #{balanced_batch_norm.2} parent=0 // pred_check
    %p11 = pneg %p10
  $region7: #{balanced_batch_norm.2} parent=0 // pred_check_branch
    %13 = sbr.rel (%p11) target = $region9
  $region8: #{balanced_batch_norm.2} parent=0 // pred_region
    %vm14 = vcmask 3072
    %15 = vst.msk [vmem:[%s1] sm:$0xf] %vm14, 0.0
    %16 = vst.msk [vmem:[%s2] sm:$0xf] %vm14, 0.0
  $region9: #{balanced_batch_norm.2} parent=0 // pred_fallthru
    _
  %v17 = vld [vmem:[%s0] sm:$0xff]
  %v18 = vld [vmem:[%s1] sm:$0xf]
  %20 = vst [vmem:[#allocation1] ss:$2 sm:$0xff] %v17
  %v21 = vld.sshfl [vmem:[#allocation1] sm:$0xff pattern:$0x75316420]
  %v22 = vld.sshfl [vmem:[#allocation1 + $0x8] sm:$0xff pattern:$0x75316420]
  %vm25 = vcmask 1043456
  %v26 = vsel %vm25, %v21, 0.0
  %v27 = vsel %vm25, %v22, 0.0
  %v28 = vadd.f32 %v26, %v27
  %29 = vadd.xlane.f32.xlu0 %v28
  %v30 = vpop.xlane.xlu0 %29
  %v31 = vadd.f32 %v18, %v30
  %vm32 = vcmask 3072
  %33 = vst.msk [vmem:[%s1] sm:$0xf] %vm32, %v31
  %v34 = vld [vmem:[%s2] sm:$0xf]
  %v35 = vmul.f32 %v17, %v17
  %37 = vst [vmem:[#allocation1] ss:$2 sm:$0xff] %v35
  %v38 = vld.sshfl [vmem:[#allocation1] sm:$0xff pattern:$0x75316420]
  %v39 = vld.sshfl [vmem:[#allocation1 + $0x8] sm:$0xff pattern:$0x75316420]
  %v42 = vsel %vm25, %v38, 0.0
  %v43 = vsel %vm25, %v39, 0.0
  %v44 = vadd.f32 %v42, %v43
  %45 = vadd.xlane.f32.xlu0 %v44
  %v46 = vpop.xlane.xlu0 %45
  %v47 = vadd.f32 %v34, %v46
  %48 = vst.msk [vmem:[%s2] sm:$0xf] %vm32, %v47
  // Predicated region
  $region10: #{balanced_batch_norm.2} parent=0 // pred_check
    _
  $region11: #{balanced_batch_norm.2} parent=0 // pred_check_branch
    %50 = sbr.rel (0) target = $region13
  $region12: #{balanced_batch_norm.2} parent=0 // pred_region
    _
  $region13: #{balanced_batch_norm.2} parent=0 // pred_fallthru
    _
  // Predicated region
  $region14: #{balanced_batch_norm.2} parent=0 // pred_check
    _
  $region15: #{balanced_batch_norm.2} parent=0 // pred_check_branch
    %52 = sbr.rel (0) target = $region17
  $region16: #{balanced_batch_norm.2} parent=0 // pred_region
    _
  $region17: #{balanced_batch_norm.2} parent=0 // pred_fallthru
    _
  // Predicated region
  $region18: #{balanced_batch_norm.2} parent=0 // pred_check
    _
  $region19: #{balanced_batch_norm.2} parent=0 // pred_check_branch
    %54 = sbr.rel (0) target = $region21
  $region20: #{balanced_batch_norm.2} parent=0 // pred_region
    _
  $region21: #{balanced_batch_norm.2} parent=0 // pred_fallthru
    _
  // Predicated region
  $region22: #{balanced_batch_norm.2} parent=0 // pred_check
    _
  $region23: #{balanced_batch_norm.2} parent=0 // pred_check_branch
    %56 = sbr.rel (0) target = $region25
  $region24: #{balanced_batch_norm.2} parent=0 // pred_region
    _
  $region25: #{balanced_batch_norm.2} parent=0 // pred_fallthru
    _

// kernel: balanced_batch_norm.3
$region0: #{balanced_batch_norm.3}
  #allocation0 [shape = 'u32[]', space=smem, size = 0x4, offset = 0x4, fixed_abs, tag = 'smem constant byte address 0x4 - core index']
  #allocation1 [shape = 'u32[72,128]{1,0:T(1,128)}', space=vmem, size = 0x9000, scoped, tag = 'internal scratch']
  %s0 = inlined_call_operand.vmem [shape: f32[2,4,256], index: 0, kind: input, shape index: {}]
  %s1 = inlined_call_operand.vmem [shape: f32[4,1], index: 1, kind: input, shape index: {}]
  %s2 = inlined_call_operand.vmem [shape: f32[4,1], index: 2, kind: input, shape index: {}]
  %s3 = inlined_call_operand.vmem [shape: f32[2,4,256], index: 3, kind: output, shape index: {}]
  %s4 = sld [smem:[#allocation0]]
  $region45: #{balanced_batch_norm.3} parent=0
    _
  %s6 = ssub.s32 1, %s4
  %s7 = scalar_select 0, %s6, %s4
  loop: start=0, step=1, limit=4
  $region2: #{balanced_batch_norm.3} parent=0 // loop_pre_header
    _
  $region3: #{balanced_batch_norm.3} parent=0 // loop_header
    %s9 = sphi 0, %s13
    %p10 = scmp.ge.s32.totalorder %s9, 4
    %s16 = sphi 0, %s35
    %s17 = sphi 0, %s31
    %s18 = sphi 0, %s27
    %s19 = sphi 0, %s16
    %s20 = sphi 0, %s17
    %s21 = sphi 0, %s18
    %s22 = sphi 0, %s19
    %s23 = sphi 0, %s20
    %s24 = sphi 0, %s21
    %s42 = sphi 0, %s44
    %s45 = sphi 0, %s42
    %s46 = sphi 0, %s45
    %s62 = sphi 0, %s46
    %s68 = sphi 0, %s70
    %s71 = sphi 0, %s68
    %s72 = sphi 0, %s71
    %s88 = sphi 0, %s72
    %s94 = sphi 0, %s96
    %s97 = sphi 0, %s94
    %s98 = sphi 0, %s97
    %s114 = sphi 0, %s98
    %s124 = sphi 0, %s126
    %s127 = sphi 0, %s124
    %s128 = sphi 0, %s127
    %s144 = sphi 0, %s128
  $region4: #{balanced_batch_norm.3} parent=0 // loop_header_branch
    %12 = sbr.rel (%p10) target = $region8
  $region5: #{balanced_batch_norm.3} parent=0 // loop_body
    %s14 = ssub.s32 %s9, 1
    %s15 = ssub.s32 %s9, 2
    %s25 = sadd.s32 1, %s18
    %p26 = scmp.ge.s32.totalorder %s25, 1
    %s27 = scalar_select %p26, 0, %s25
    %s28 = sadd.s32 1, %s17
    %s29 = scalar_select %p26, %s28, %s17
    %p30 = scmp.ge.s32.totalorder %s29, 1
    %s31 = scalar_select %p30, 0, %s29
    %s32 = sadd.s32 1, %s16
    %s33 = scalar_select %p30, %s32, %s16
    %p34 = scmp.ge.s32.totalorder %s33, 2
    %s35 = scalar_select %p34, 0, %s33
    %s36 = ssub.s32 %s16, %s35
    %s37 = ssub.s32 %s17, %s31
    %s38 = sor.u32 %s36, %s37
    %s39 = ssub.s32 %s18, %s27
    %s40 = sor.u32 %s38, %s39
    %p41 = scmp.eq.s32.totalorder %s40, 0
    %s43 = sadd.s32 %s42, 1
    %s44 = scalar_select %p41, %s42, %s43
    %p47 = pneg %p41
    %p48 = scmp.eq.s32.totalorder %s9, 1
    %p49 = por %p47, %p48
    %p50 = scmp.ne.s32.totalorder %s42, %s45
    %p51 = scmp.eq.s32.totalorder %s9, 0
    %p52 = por %p50, %p51
    %p53 = scmp.ne.s32.totalorder %s42, %s45
    %p54 = scmp.eq.s32.totalorder %s14, 1
    %p55 = por %p53, %p54
    %p56 = scmp.ne.s32.totalorder %s45, %s46
    %p57 = scmp.eq.s32.totalorder %s14, 0
    %p58 = por %p56, %p57
    %p59 = scmp.ne.s32.totalorder %s45, %s46
    %p60 = scmp.eq.s32.totalorder %s15, 1
    %p61 = por %p59, %p60
    %p63 = scmp.ne.s32.totalorder %s46, %s62
    %p64 = scmp.eq.s32.totalorder %s15, 0
    %p65 = por %p63, %p64
    %s66 = ssub.s32 %s17, %s31
    %p67 = scmp.eq.s32.totalorder %s66, 0
    %s69 = sadd.s32 %s68, 1
    %s70 = scalar_select %p67, %s68, %s69
    %p73 = pneg %p67
    %p74 = scmp.eq.s32.totalorder %s9, 1
    %p75 = por %p73, %p74
    %p76 = scmp.ne.s32.totalorder %s68, %s71
    %p77 = scmp.eq.s32.totalorder %s9, 0
    %p78 = por %p76, %p77
    %p79 = scmp.ne.s32.totalorder %s68, %s71
    %p80 = scmp.eq.s32.totalorder %s14, 1
    %p81 = por %p79, %p80
    %p82 = scmp.ne.s32.totalorder %s71, %s72
    %p83 = scmp.eq.s32.totalorder %s14, 0
    %p84 = por %p82, %p83
    %p85 = scmp.ne.s32.totalorder %s71, %s72
    %p86 = scmp.eq.s32.totalorder %s15, 1
    %p87 = por %p85, %p86
    %p89 = scmp.ne.s32.totalorder %s72, %s88
    %p90 = scmp.eq.s32.totalorder %s15, 0
    %p91 = por %p89, %p90
    %s92 = ssub.s32 %s17, %s31
    %p93 = scmp.eq.s32.totalorder %s92, 0
    %s95 = sadd.s32 %s94, 1
    %s96 = scalar_select %p93, %s94, %s95
    %p99 = pneg %p93
    %p100 = scmp.eq.s32.totalorder %s9, 1
    %p101 = por %p99, %p100
    %p102 = scmp.ne.s32.totalorder %s94, %s97
    %p103 = scmp.eq.s32.totalorder %s9, 0
    %p104 = por %p102, %p103
    %p105 = scmp.ne.s32.totalorder %s94, %s97
    %p106 = scmp.eq.s32.totalorder %s14, 1
    %p107 = por %p105, %p106
    %p108 = scmp.ne.s32.totalorder %s97, %s98
    %p109 = scmp.eq.s32.totalorder %s14, 0
    %p110 = por %p108, %p109
    %p111 = scmp.ne.s32.totalorder %s97, %s98
    %p112 = scmp.eq.s32.totalorder %s15, 1
    %p113 = por %p111, %p112
    %p115 = scmp.ne.s32.totalorder %s98, %s114
    %p116 = scmp.eq.s32.totalorder %s15, 0
    %p117 = por %p115, %p116
    %s118 = ssub.s32 %s16, %s35
    %s119 = ssub.s32 %s17, %s31
    %s120 = sor.u32 %s118, %s119
    %s121 = ssub.s32 %s18, %s27
    %s122 = sor.u32 %s120, %s121
    %p123 = scmp.eq.s32.totalorder %s122, 0
    %s125 = sadd.s32 %s124, 1
    %s126 = scalar_select %p123, %s124, %s125
    %p129 = pneg %p123
    %p130 = scmp.eq.s32.totalorder %s9, 1
    %p131 = por %p129, %p130
    %p132 = scmp.ne.s32.totalorder %s124, %s127
    %p133 = scmp.eq.s32.totalorder %s9, 0
    %p134 = por %p132, %p133
    %p135 = scmp.ne.s32.totalorder %s124, %s127
    %p136 = scmp.eq.s32.totalorder %s14, 1
    %p137 = por %p135, %p136
    %p138 = scmp.ne.s32.totalorder %s127, %s128
    %p139 = scmp.eq.s32.totalorder %s14, 0
    %p140 = por %p138, %p139
    %p141 = scmp.ne.s32.totalorder %s127, %s128
    %p142 = scmp.eq.s32.totalorder %s15, 1
    %p143 = por %p141, %p142
    %p145 = scmp.ne.s32.totalorder %s128, %s144
    %p146 = scmp.eq.s32.totalorder %s15, 0
    %p147 = por %p145, %p146
    %p148 = scmp.le.s32.totalorder 1, %s9
    %p149 = scmp.lt.s32.totalorder %s9, 3
    %p150 = pnand %p148, %p149
    %p151 = pneg %p150
    // Predicated region
    $region9: #{balanced_batch_norm.3} parent=5 // pred_check
      _
    $region10: #{balanced_batch_norm.3} parent=5 // pred_check_branch
      %153 = sbr.rel (%p150) target = $region12
    $region11: #{balanced_batch_norm.3} parent=5 // pred_region
      %s154 = ssub.s32 %s9, 1
      // Predicated region
      $region13: #{balanced_batch_norm.3} parent=11 // pred_check
        %p155 = pneg %p84
      $region14: #{balanced_batch_norm.3} parent=11 // pred_check_branch
        %157 = sbr.rel (%p155) target = $region16
      $region15: #{balanced_batch_norm.3} parent=11 // pred_region
        %p158 = scmp.lt.s32.totalorder %s20, 0
        %s159 = scalar_select %p158, %s20, 0
        %s160 = smul.addr %s159, 4
        %s161 = scalar_lea.vmem %s1, %s160
      $region16: #{balanced_batch_norm.3} parent=11 // pred_fallthru
        _
      // Predicated region
      $region17: #{balanced_batch_norm.3} parent=11 // pred_check
        %p162 = pneg %p110
      $region18: #{balanced_batch_norm.3} parent=11 // pred_check_branch
        %164 = sbr.rel (%p162) target = $region20
      $region19: #{balanced_batch_norm.3} parent=11 // pred_region
        %p165 = scmp.lt.s32.totalorder %s20, 0
        %s166 = scalar_select %p165, %s20, 0
        %s167 = smul.addr %s166, 4
        %s168 = scalar_lea.vmem %s2, %s167
      $region20: #{balanced_batch_norm.3} parent=11 // pred_fallthru
        _
    $region12: #{balanced_batch_norm.3} parent=5 // pred_fallthru
      _
    %p169 = scmp.lt.s32.totalorder %s9, 2
    // Predicated region
    $region21: #{balanced_batch_norm.3} parent=5 // pred_check
      %p170 = pneg %p169
    $region22: #{balanced_batch_norm.3} parent=5 // pred_check_branch
      %172 = sbr.rel (%p170) target = $region24
    $region23: #{balanced_batch_norm.3} parent=5 // pred_region
      // Predicated region
      $region25: #{balanced_batch_norm.3} parent=23 // pred_check
        %p173 = pneg %p52
      $region26: #{balanced_batch_norm.3} parent=23 // pred_check_branch
        %175 = sbr.rel (%p173) target = $region28
      $region27: #{balanced_batch_norm.3} parent=23 // pred_region
        %s176 = smul.u32 2, %s18
        %p177 = scmp.lt.s32.totalorder %s16, 1
        %s178 = scalar_select %p177, %s16, 1
        %p179 = scmp.lt.s32.totalorder %s17, 0
        %s180 = scalar_select %p179, %s17, 0
        %p181 = scmp.lt.s32.totalorder %s176, 1
        %s182 = scalar_select %p181, %s176, 1
        %s183 = smul.addr %s180, 2
        %s184 = sadd.s32 %s182, %s183
        %s185 = smul.addr %s178, 2
        %s186 = sadd.s32 %s184, %s185
        %s187 = smul.addr %s186, 4
        %s188 = scalar_lea.vmem %s0, %s187
        %s189 = smul.u32 2, %s18
      $region28: #{balanced_batch_norm.3} parent=23 // pred_fallthru
        _
    $region24: #{balanced_batch_norm.3} parent=5 // pred_fallthru
      _
    %p190 = scmp.le.s32.totalorder 1, %s9
    %p191 = scmp.lt.s32.totalorder %s9, 3
    %p192 = pnand %p190, %p191
    %p193 = pneg %p192
    // Predicated region
    $region29: #{balanced_batch_norm.3} parent=5 // pred_check
      _
    $region30: #{balanced_batch_norm.3} parent=5 // pred_check_branch
      %195 = sbr.rel (%p192) target = $region32
    $region31: #{balanced_batch_norm.3} parent=5 // pred_region
      %s196 = ssub.s32 %s9, 1
      %s197 = smul.u32 2, %s21
      %p198 = scmp.lt.s32.totalorder %s19, 1
      %s199 = scalar_select %p198, %s19, 1
      %p200 = scmp.lt.s32.totalorder %s20, 0
      %s201 = scalar_select %p200, %s20, 0
      %p202 = scmp.lt.s32.totalorder %s197, 1
      %s203 = scalar_select %p202, %s197, 1
      %s204 = smul.addr %s201, 2
      %s205 = sadd.s32 %s203, %s204
      %s206 = smul.addr %s199, 2
      %s207 = sadd.s32 %s205, %s206
      %s208 = smul.addr %s207, 4
      %s209 = scalar_lea.vmem %s0, %s208
      %p210 = pneg %p58
      %p211 = pneg %p55
      %p212 = scmp.lt.s32.totalorder %s20, 0
      %s213 = scalar_select %p212, %s20, 0
      %s214 = smul.addr %s213, 4
      %s215 = scalar_lea.vmem %s1, %s214
      %p216 = pneg %p84
      %p217 = pneg %p81
      %p218 = scmp.lt.s32.totalorder %s20, 0
      %s219 = scalar_select %p218, %s20, 0
      %s220 = smul.addr %s219, 4
      %s221 = scalar_lea.vmem %s2, %s220
      %p222 = pneg %p110
      %p223 = pneg %p107
      %p224 = pneg %p140
      %p225 = pneg %p137
      %s226 = smul.u32 2, %s21
      %p227 = scmp.lt.s32.totalorder %s19, 1
      %s228 = scalar_select %p227, %s19, 1
      %p229 = scmp.lt.s32.totalorder %s20, 0
      %s230 = scalar_select %p229, %s20, 0
      %p231 = scmp.lt.s32.totalorder %s226, 1
      %s232 = scalar_select %p231, %s226, 1
      %s233 = smul.addr %s230, 2
      %s234 = sadd.s32 %s232, %s233
      %s235 = smul.addr %s228, 2
      %s236 = sadd.s32 %s234, %s235
      %s237 = smul.addr %s236, 4
      %s238 = scalar_lea.vmem %s3, %s237
      %s239 = smul.u32 2, %s21
      %p240 = scmp.lt.s32.totalorder %s19, 1
      %s241 = scalar_select %p240, %s19, 1
      %p242 = scmp.lt.s32.totalorder %s20, 0
      %s243 = scalar_select %p242, %s20, 0
      %p244 = scmp.lt.s32.totalorder %s239, 1
      %s245 = scalar_select %p244, %s239, 1
      %s246 = smul.addr %s243, 2
      %s247 = sadd.s32 %s245, %s246
      %s248 = smul.addr %s241, 2
      %s249 = sadd.s32 %s247, %s248
      %s250 = smul.addr %s249, 4
      %s251 = scalar_lea.vmem %s0, %s250
      %s252 = smul.u32 2, %s21
      %p253 = scmp.lt.s32.totalorder %s20, 0
      %s254 = scalar_select %p253, %s20, 0
      %s255 = smul.addr %s254, 4
      %s256 = scalar_lea.vmem %s1, %s255
      %p257 = scmp.lt.s32.totalorder %s20, 0
      %s258 = scalar_select %p257, %s20, 0
      %s259 = smul.addr %s258, 4
      %s260 = scalar_lea.vmem %s2, %s259
      %s261 = smul.u32 2, %s21
      %p262 = scmp.lt.s32.totalorder %s19, 1
      %s263 = scalar_select %p262, %s19, 1
      %p264 = scmp.lt.s32.totalorder %s20, 0
      %s265 = scalar_select %p264, %s20, 0
      %p266 = scmp.lt.s32.totalorder %s261, 1
      %s267 = scalar_select %p266, %s261, 1
      %s268 = smul.addr %s265, 2
      %s269 = sadd.s32 %s267, %s268
      %s270 = smul.addr %s263, 2
      %s271 = sadd.s32 %s269, %s270
      %s272 = smul.addr %s271, 4
      %s273 = scalar_lea.vmem %s3, %s272
      %s274 = smul.u32 2, %s21
      %v275 = vld [vmem:[%s251] sm:$0xff]
      %v276 = vld [vmem:[%s256] sm:$0xf]
      %v277 = vld [vmem:[%s260] sm:$0xf]
      %279 = vset.pattern.permute.xlu0 0
      %280 = vperm.xlu0 %279, %v276
      %v281 = vpop.permute.xlu0 %280
      %v283 = vunpack.c.l.s4 839922192
      %v284 = vunpack.c.0.s8 %v283
      %v285 = vperm.slane %v281, %v284
      %v287 = vmul.f32 %v275, %v285
      %289 = vset.pattern.permute.xlu0 0
      %290 = vperm.xlu0 %289, %v277
      %v291 = vpop.permute.xlu0 %290
      %v293 = vunpack.c.l.s4 839922192
      %v294 = vunpack.c.0.s8 %v293
      %v295 = vperm.slane %v291, %v294
      %v297 = vadd.f32 %v287, %v295
      %298 = vst [vmem:[%s273] sm:$0xff] %v297
      %s299 = smul.u32 2, %s21
      %p300 = scmp.lt.s32.totalorder %s19, 1
      %s301 = scalar_select %p300, %s19, 1
      %p302 = scmp.lt.s32.totalorder %s20, 0
      %s303 = scalar_select %p302, %s20, 0
      %p304 = scmp.lt.s32.totalorder %s299, 1
      %s305 = scalar_select %p304, %s299, 1
      %s306 = smul.addr %s303, 2
      %s307 = sadd.s32 %s305, %s306
      %s308 = smul.addr %s301, 2
      %s309 = sadd.s32 %s307, %s308
      %s310 = smul.addr %s309, 4
      %s311 = scalar_lea.vmem %s3, %s310
      // Predicated region
      $region33: #{balanced_batch_norm.3} parent=31 // pred_check
        %p312 = pneg %p137
      $region34: #{balanced_batch_norm.3} parent=31 // pred_check_branch
        %314 = sbr.rel (%p312) target = $region36
      $region35: #{balanced_batch_norm.3} parent=31 // pred_region
        %s315 = smul.u32 2, %s21
      $region36: #{balanced_batch_norm.3} parent=31 // pred_fallthru
        _
    $region32: #{balanced_batch_norm.3} parent=5 // pred_fallthru
      _
    %p316 = scmp.le.s32.totalorder 2, %s9
    // Predicated region
    $region37: #{balanced_batch_norm.3} parent=5 // pred_check
      %p317 = pneg %p316
    $region38: #{balanced_batch_norm.3} parent=5 // pred_check_branch
      %319 = sbr.rel (%p317) target = $region40
    $region39: #{balanced_batch_norm.3} parent=5 // pred_region
      %s320 = ssub.s32 %s9, 2
      // Predicated region
      $region41: #{balanced_batch_norm.3} parent=39 // pred_check
        %p321 = pneg %p143
      $region42: #{balanced_batch_norm.3} parent=39 // pred_check_branch
        %323 = sbr.rel (%p321) target = $region44
      $region43: #{balanced_batch_norm.3} parent=39 // pred_region
        %s324 = smul.u32 2, %s24
        %p325 = scmp.lt.s32.totalorder %s22, 1
        %s326 = scalar_select %p325, %s22, 1
        %p327 = scmp.lt.s32.totalorder %s23, 0
        %s328 = scalar_select %p327, %s23, 0
        %p329 = scmp.lt.s32.totalorder %s324, 1
        %s330 = scalar_select %p329, %s324, 1
        %s331 = smul.addr %s328, 2
        %s332 = sadd.s32 %s330, %s331
        %s333 = smul.addr %s326, 2
        %s334 = sadd.s32 %s332, %s333
        %s335 = smul.addr %s334, 4
        %s336 = scalar_lea.vmem %s3, %s335
      $region44: #{balanced_batch_norm.3} parent=39 // pred_fallthru
        _
    $region40: #{balanced_batch_norm.3} parent=5 // pred_fallthru
      _
  $region6: #{balanced_batch_norm.3} parent=0 // loop_footer
    %s13 = sadd.s32 1, %s9
  $region7: #{balanced_batch_norm.3} parent=0 // loop_footer_branch
    %8 = sbr.rel target = $region3
  $region8: #{balanced_batch_norm.3} parent=0 // loop_exit
    _

</llo_original>
